<compile_context>
chip_gen: v6e
topology: v6e:2x2x1
jax: 0.10.0
libtpu: 0.0.40
codegen_flags: <defaults>
</compile_context>

<pallas_src>
import functools
import math

import jax
import jax.numpy as jnp
from jax.experimental import pallas as pl
from jax.experimental.pallas import tpu as pltpu


def _cdconv_kernel(x_ref, b_ref, o_ref, *, dil):
    """One block of Nb images per grid step, fused into a single matmul.

    x_ref: (Nb, H, W*Cin)      flattened NHWC rows (compute dtype)
    b_ref: (3*W*Cin, W*Cout)   kh-concatenated banded weights (CD folded)
    o_ref: (Nb, H, W*Cout)     flattened NHWC output rows (lane dense)
    """
    nb, img_h, wcin = x_ref.shape
    rows = nb * img_h
    wcout = o_ref.shape[2]
    cdtype = b_ref.dtype

    # Load once; do the row shifts / boundary masking in f32 (sublane roll of
    # packed sub-32-bit types is the only risky lowering; the casts are cheap
    # VPU work and the bf16 MXU path is preserved by casting back pre-dot).
    x = x_ref[...].reshape(rows, wcin).astype(jnp.float32)
    # Per-image row index: the H zero-padding mask must not leak across image
    # boundaries inside the packed (Nb*H)-row block.
    h = jax.lax.broadcasted_iota(jnp.int32, (rows, 1), 0) % img_h

    taps = []
    for kh in range(3):
        s = (kh - 1) * dil                       # input-row offset of this tap
        if s == 0:
            taps.append(x)
        else:
            # rolled[r] = x[(r + s) % rows] -- sublane rotation on the XLU slot.
            rolled = pltpu.roll(x, shift=(-s) % rows, axis=0)
            valid = (h < img_h - s) if s > 0 else (h >= -s)
            taps.append(jnp.where(valid, rolled, 0.0))

    # Lane-axis concat -> single MXU matmul with K = 3*W*Cin.
    xs = jnp.concatenate(taps, axis=1).astype(cdtype)        # (rows, 3*W*Cin)
    acc = jnp.dot(xs, b_ref[...], preferred_element_type=jnp.float32)
    o_ref[...] = acc.reshape(nb, img_h, wcout).astype(o_ref.dtype)


def pack_cdconv_weight(weight_oihw, width, dilation, dtype=jnp.bfloat16):
    """Folds the central difference + kw band (with W zero pad) into one matrix.

    Returns (3*W*Cin, W*Cout); row block kh holds the banded weights of tap
    row kh.  Build once per (weight, W, dilation) -- keep out of the forward jit.
    """
    assert weight_oihw.shape[2] == 3 and weight_oihw.shape[3] == 3
    cout, cin = weight_oihw.shape[0], weight_oihw.shape[1]
    d = dilation
    wt = jnp.transpose(weight_oihw, (2, 3, 1, 0)).astype(jnp.float32)  # (3,3,Cin,Cout)
    # Fold -yc into the center tap (valid because padding == dilation and
    # stride == 1: the center tap of the padded dilated conv reads x[h, w]).
    wt = wt.at[1, 1].add(-jnp.sum(wt, axis=(0, 1)))
    # eyes[kw, wi, w] = 1 iff wi == w + (kw-1)*d   (the W zero-padding band).
    eyes = jnp.stack([jnp.eye(width, k=(1 - kw) * d, dtype=jnp.float32)
                      for kw in range(3)])
    band = jnp.einsum('kij,hkab->hiajb', eyes, wt)          # (3, W, Cin, W, Cout)
    return band.reshape(3 * width * cin, width * cout).astype(dtype)


def _pick_block_batch(n, h, target_rows=256):
    """Images per grid step: keep M = nb*h MXU-sized, prefer >=2 grid steps."""
    nb = 1
    for cand in range(1, n + 1):
        if n % cand == 0 and cand * h <= target_rows:
            nb = cand
    if n // nb < 2:              # prefer >=2 grid steps (megacore) ...
        for cand in range(nb - 1, 0, -1):
            if n % cand == 0 and cand * h >= 128 and n // cand >= 2:
                nb = cand        # ... but only if M stays >= 128 rows per step
                break
    return nb


def cdconv2d_nhwc(x_nhwc, b_packed, *, dilation, single_buffer_weights=True):
    """Hot path: NHWC activations, pre-packed banded weights (see pack_cdconv_weight)."""
    assert dilation in (1, 2), 'dilation for cd_conv should be in 1 or 2'
    n, height, width, cin = x_nhwc.shape
    wcin = width * cin
    assert b_packed.shape[0] == 3 * wcin, 'packed weights do not match x'
    wcout = b_packed.shape[1]
    cout = wcout // width
    assert height > 2 * dilation, 'roll-based H padding needs H > 2*dilation'

    out_dtype = x_nhwc.dtype
    cdtype = b_packed.dtype
    x_flat = x_nhwc.astype(cdtype).reshape(n, height, wcin)  # free reshape (NHWC)

    nb = _pick_block_batch(n, height)
    grid = (n // nb,)

    b_spec_kwargs = {}
    if single_buffer_weights:
        # Constant index_map -> never re-fetched; single buffering halves its
        # VMEM footprint (matters most on v7x's 64 MiB VMEM).
        b_spec_kwargs['pipeline_mode'] = pl.Buffered(1)
    b_spec = pl.BlockSpec((3 * wcin, wcout), lambda i: (0, 0), **b_spec_kwargs)

    itemsize = jnp.dtype(cdtype).itemsize
    out_itemsize = jnp.dtype(out_dtype).itemsize
    b_bytes = 3 * wcin * wcout * itemsize
    x_blk_bytes = nb * height * wcin * itemsize
    o_blk_bytes = nb * height * wcout * out_itemsize
    vmem_limit = max(
        (1 if single_buffer_weights else 2) * b_bytes
        + 2 * (x_blk_bytes + o_blk_bytes) + (4 << 20),
        16 << 20)

    cost = pl.CostEstimate(
        flops=2 * n * height * width * 9 * cin * cout,   # true dense-conv FLOPs
        transcendentals=0,
        bytes_accessed=(x_flat.size * itemsize + b_bytes
                        + n * height * wcout * out_itemsize))

    kernel = functools.partial(_cdconv_kernel, dil=dilation)

    out_flat = pl.pallas_call(
        kernel,
        out_shape=jax.ShapeDtypeStruct((n, height, wcout), out_dtype),
        grid_spec=pltpu.PrefetchScalarGridSpec(
            num_scalar_prefetch=0,
            grid=grid,
            in_specs=[
                pl.BlockSpec((nb, height, wcin), lambda i: (i, 0, 0)),
                b_spec,
            ],
            out_specs=pl.BlockSpec((nb, height, wcout), lambda i: (i, 0, 0)),
        ),
        compiler_params=pltpu.CompilerParams(
            dimension_semantics=("parallel",),
            vmem_limit_bytes=int(vmem_limit)),
        cost_estimate=cost,
    )(x_flat, b_packed)

    return out_flat.reshape(n, height, width, cout)


def cdconv2d(x_nchw, weight_oihw, *, stride=1, padding=1, dilation=1, groups=1,
             compute_dtype=jnp.bfloat16, single_buffer_weights=True):
    """Drop-in NCHW wrapper mirroring the PyTorch module's forward."""
    assert dilation in (1, 2) and padding == dilation, 'padding for cd_conv set wrong'
    assert stride == 1 and groups == 1, 'kernel supports stride=1, groups=1'
    # TODO(synk): keep the surrounding model in NHWC; these two transposes are
    # extra HBM round trips that the cdconv2d_nhwc entry point avoids.
    width = x_nchw.shape[3]
    b_packed = pack_cdconv_weight(weight_oihw, width, dilation, dtype=compute_dtype)
    x_nhwc = jnp.transpose(x_nchw, (0, 2, 3, 1))
    y = cdconv2d_nhwc(x_nhwc, b_packed, dilation=dilation,
                      single_buffer_weights=single_buffer_weights)
    return jnp.transpose(y, (0, 3, 1, 2))


def _reference(x_nchw, w, *, dilation):
    d = dilation
    dn = ("NCHW", "OIHW", "NCHW")
    y = jax.lax.conv_general_dilated(
        x_nchw, w, window_strides=(1, 1), padding=[(d, d), (d, d)],
        rhs_dilation=(d, d), dimension_numbers=dn)
    w_c = jnp.sum(w, axis=(2, 3), keepdims=True)
    yc = jax.lax.conv_general_dilated(
        x_nchw, w_c, window_strides=(1, 1), padding=[(0, 0), (0, 0)],
        dimension_numbers=dn)
    return y - yc


if __name__ == "__main__":
    # Module config: CDConv2d(4, 8, kernel_size=3, stride=1,
    #                         padding=dilation, dilation=dilation, bias=False)
    N, Cin, H, W, Cout = 2, 4, 16, 16, 8

    key = jax.random.PRNGKey(0)
    kx, kwkey = jax.random.split(key)
    fan_in = Cin * 3 * 3                        # kaiming_uniform_(a=sqrt(5)) bound
    bound = 1.0 / math.sqrt(fan_in)
    weight = jax.random.uniform(kwkey, (Cout, Cin, 3, 3), jnp.float32,
                                minval=-bound, maxval=bound)
    x_nchw = jax.random.normal(kx, (N, Cin, H, W), jnp.float32)

    # Hot path stays NHWC; layout conversion + weight packing happen once,
    # outside the per-forward jit.
    x_nhwc = jnp.transpose(x_nchw, (0, 2, 3, 1))

    single_buffer = True
    for dilation in (1, 2):
        ref_nhwc = jnp.transpose(_reference(x_nchw, weight, dilation=dilation),
                                 (0, 2, 3, 1))
        # f32 path pins the exact math; bf16 path is the production config.
        for cdtype, atol, rtol in ((jnp.float32, 1e-4, 1e-4),
                                   (jnp.bfloat16, 5e-2, 5e-2)):
            b_packed = pack_cdconv_weight(weight, W, dilation, dtype=cdtype)

            def make_fwd(sbw, _dil=dilation):
                return jax.jit(functools.partial(
                    cdconv2d_nhwc, dilation=_dil, single_buffer_weights=sbw))

            try:
                out = jax.block_until_ready(
                    make_fwd(single_buffer)(x_nhwc, b_packed))
            except Exception:
                # TODO(synk): pipeline_mode=pl.Buffered(1) not supported by this
                # jax version -- fall back to default double buffering.
                single_buffer = False
                out = jax.block_until_ready(make_fwd(False)(x_nhwc, b_packed))

            assert out.shape == (N, H, W, Cout)
            assert jnp.allclose(out, ref_nhwc, atol=atol, rtol=rtol), (
                f"mismatch vs reference (dilation={dilation}, dtype={cdtype})")

    # Also exercise the drop-in NCHW wrapper once.
    out_nchw = jax.block_until_ready(
        cdconv2d(x_nchw, weight, padding=1, dilation=1,
                 compute_dtype=jnp.bfloat16, single_buffer_weights=single_buffer))
    assert out_nchw.shape == (N, Cout, H, W)
    assert jnp.allclose(out_nchw, _reference(x_nchw, weight, dilation=1),
                        atol=5e-2, rtol=5e-2)

    print("KERNEL_OK")
</pallas_src>

<mosaic_0001>
module attributes {stable_mosaic.version = 11 : i64} {
  func.func @_cdconv_kernel(%arg0: i32, %arg1: memref<2x16x64xf32, #tpu.memory_space<vmem>>, %arg2: memref<192x128xf32, #tpu.memory_space<vmem>>, %arg3: memref<2x16x128xf32, #tpu.memory_space<vmem>>) attributes {dimension_semantics = [#tpu.dimension_semantics<parallel>], iteration_bounds = array<i64: 1>, scalar_prefetch = 0 : i64, scratch_operands = 0 : i64, tpu.core_type = #tpu.core_type<tc>, window_params = [{transform_indices = @transform_0, window_bounds = array<i64: 2, 16, 64>}, {pipeline_mode = #tpu.pipeline_mode<synchronous>, transform_indices = @transform_1, window_bounds = array<i64: 192, 128>}, {transform_indices = @transform_2, window_bounds = array<i64: 2, 16, 128>}]} {
    %c0 = arith.constant 0 : index
    %c0_0 = arith.constant 0 : index
    %c0_1 = arith.constant 0 : index
    %0 = vector.load %arg1[%c0, %c0_0, %c0_1] : memref<2x16x64xf32, #tpu.memory_space<vmem>>, vector<2x16x64xf32>
    %1 = vector.shape_cast %0 : vector<2x16x64xf32> to vector<32x64xf32>
    %2 = tpu.iota {dimensions = array<i32: 0>} : vector<32x1xi32>
    %c16_i32 = arith.constant 16 : i32
    %c0_i32 = arith.constant 0 : i32
    %3 = arith.cmpi eq, %c16_i32, %c0_i32 : i32
    %c1_i32 = arith.constant 1 : i32
    %4 = arith.select %3, %c1_i32, %c16_i32 : i32
    %5 = vector.broadcast %4 : i32 to vector<32x1xi32>
    %6 = arith.remsi %2, %5 : vector<32x1xi32>
    %c0_i32_2 = arith.constant 0 : i32
    %7 = vector.broadcast %c0_i32_2 : i32 to vector<32x1xi32>
    %8 = arith.cmpi ne, %6, %7 : vector<32x1xi32>
    %c0_i32_3 = arith.constant 0 : i32
    %9 = vector.broadcast %c0_i32_3 : i32 to vector<32x1xi32>
    %10 = arith.cmpi slt, %6, %9 : vector<32x1xi32>
    %c0_i32_4 = arith.constant 0 : i32
    %11 = arith.cmpi slt, %4, %c0_i32_4 : i32
    %12 = vector.broadcast %11 : i1 to vector<32x1xi1>
    %13 = vector.broadcast %12 : vector<32x1xi1> to vector<32x1xi1>
    %14 = arith.xori %10, %13 : vector<32x1xi1>
    %15 = arith.andi %14, %8 : vector<32x1xi1>
    %16 = vector.broadcast %4 : i32 to vector<32x1xi32>
    %17 = arith.addi %6, %16 : vector<32x1xi32>
    %18 = arith.select %15, %17, %6 : vector<32x1xi1>, vector<32x1xi32>
    %c1_i32_5 = arith.constant 1 : i32
    %19 = tpu.dynamic_rotate %1 by %c1_i32_5 dim 0 : vector<32x64xf32>, i32 -> vector<32x64xf32>
    %c1_i32_6 = arith.constant 1 : i32
    %20 = vector.broadcast %c1_i32_6 : i32 to vector<32x1xi32>
    %21 = arith.cmpi sge, %18, %20 : vector<32x1xi32>
    %cst = arith.constant 0.000000e+00 : f32
    %22 = vector.shape_cast %21 : vector<32x1xi1> to vector<32x1xi1>
    %23 = vector.broadcast %22 : vector<32x1xi1> to vector<32x64xi1>
    %24 = vector.broadcast %cst : f32 to vector<32x64xf32>
    %25 = arith.select %23, %19, %24 : vector<32x64xi1>, vector<32x64xf32>
    %c31_i32 = arith.constant 31 : i32
    %26 = tpu.dynamic_rotate %1 by %c31_i32 dim 0 : vector<32x64xf32>, i32 -> vector<32x64xf32>
    %c15_i32 = arith.constant 15 : i32
    %27 = vector.broadcast %c15_i32 : i32 to vector<32x1xi32>
    %28 = arith.cmpi slt, %18, %27 : vector<32x1xi32>
    %cst_7 = arith.constant 0.000000e+00 : f32
    %29 = vector.shape_cast %28 : vector<32x1xi1> to vector<32x1xi1>
    %30 = vector.broadcast %29 : vector<32x1xi1> to vector<32x64xi1>
    %31 = vector.broadcast %cst_7 : f32 to vector<32x64xf32>
    %32 = arith.select %30, %26, %31 : vector<32x64xi1>, vector<32x64xf32>
    %33 = tpu.concatenate %25, %1, %32 in 1 : vector<32x64xf32>, vector<32x64xf32>, vector<32x64xf32> -> vector<32x192xf32>
    %c0_8 = arith.constant 0 : index
    %c0_9 = arith.constant 0 : index
    %34 = vector.load %arg2[%c0_8, %c0_9] : memref<192x128xf32, #tpu.memory_space<vmem>>, vector<192x128xf32>
    %cst_10 = arith.constant dense<0.000000e+00> : vector<32x128xf32>
    %35 = tpu.matmul %33, %34, %cst_10 {dimension_numbers = #tpu.dot_dimension_numbers<[1], [0], [0], [1], [0, 0, 1, 1], [], []>} : vector<32x192xf32>, vector<192x128xf32>, vector<32x128xf32> -> vector<32x128xf32>
    %36 = vector.shape_cast %35 : vector<32x128xf32> to vector<2x16x128xf32>
    %c0_11 = arith.constant 0 : index
    %c0_12 = arith.constant 0 : index
    %c0_13 = arith.constant 0 : index
    %37 = vector.load %arg3[%c0_11, %c0_12, %c0_13] : memref<2x16x128xf32, #tpu.memory_space<vmem>>, vector<2x16x128xf32>
    tpu.vector_store %arg3[%c0_11, %c0_12, %c0_13], %36 {strides = array<i32>} : memref<2x16x128xf32, #tpu.memory_space<vmem>>, vector<2x16x128xf32>,
    return
  }
  func.func @transform_0(%arg0: i32) -> (i32, i32, i32) {
    %c0_i32 = arith.constant 0 : i32
    %c0_i32_0 = arith.constant 0 : i32
    %c0_i32_1 = arith.constant 0 : i32
    return %arg0, %c0_i32, %c0_i32_0 : i32, i32, i32
  }
  func.func @transform_1(%arg0: i32) -> (i32, i32) {
    %c0_i32 = arith.constant 0 : i32
    %c0_i32_0 = arith.constant 0 : i32
    %c0_i32_1 = arith.constant 0 : i32
    return %c0_i32, %c0_i32_0 : i32, i32
  }
  func.func @transform_2(%arg0: i32) -> (i32, i32, i32) {
    %c0_i32 = arith.constant 0 : i32
    %c0_i32_0 = arith.constant 0 : i32
    %c0_i32_1 = arith.constant 0 : i32
    return %arg0, %c0_i32, %c0_i32_0 : i32, i32, i32
  }
}

module attributes {stable_mosaic.version = 11 : i64} {
  func.func @_cdconv_kernel(%arg0: i32, %arg1: memref<2x16x64xf32, #tpu.memory_space<vmem>>, %arg2: memref<192x128xf32, #tpu.memory_space<vmem>>, %arg3: memref<2x16x128xf32, #tpu.memory_space<vmem>>) attributes {dimension_semantics = [#tpu.dimension_semantics<parallel>], iteration_bounds = array<i64: 1>, scalar_prefetch = 0 : i64, scratch_operands = 0 : i64, tpu.core_type = #tpu.core_type<tc>, window_params = [{transform_indices = @transform_0, window_bounds = array<i64: 2, 16, 64>}, {pipeline_mode = #tpu.pipeline_mode<synchronous>, transform_indices = @transform_1, window_bounds = array<i64: 192, 128>}, {transform_indices = @transform_2, window_bounds = array<i64: 2, 16, 128>}]} {
    %c0 = arith.constant 0 : index
    %c0_0 = arith.constant 0 : index
    %c0_1 = arith.constant 0 : index
    %0 = vector.load %arg1[%c0, %c0_0, %c0_1] : memref<2x16x64xf32, #tpu.memory_space<vmem>>, vector<2x16x64xf32>
    %1 = vector.shape_cast %0 : vector<2x16x64xf32> to vector<32x64xf32>
    %2 = tpu.iota {dimensions = array<i32: 0>} : vector<32x1xi32>
    %c16_i32 = arith.constant 16 : i32
    %c0_i32 = arith.constant 0 : i32
    %3 = arith.cmpi eq, %c16_i32, %c0_i32 : i32
    %c1_i32 = arith.constant 1 : i32
    %4 = arith.select %3, %c1_i32, %c16_i32 : i32
    %5 = vector.broadcast %4 : i32 to vector<32x1xi32>
    %6 = arith.remsi %2, %5 : vector<32x1xi32>
    %c0_i32_2 = arith.constant 0 : i32
    %7 = vector.broadcast %c0_i32_2 : i32 to vector<32x1xi32>
    %8 = arith.cmpi ne, %6, %7 : vector<32x1xi32>
    %c0_i32_3 = arith.constant 0 : i32
    %9 = vector.broadcast %c0_i32_3 : i32 to vector<32x1xi32>
    %10 = arith.cmpi slt, %6, %9 : vector<32x1xi32>
    %c0_i32_4 = arith.constant 0 : i32
    %11 = arith.cmpi slt, %4, %c0_i32_4 : i32
    %12 = vector.broadcast %11 : i1 to vector<32x1xi1>
    %13 = vector.broadcast %12 : vector<32x1xi1> to vector<32x1xi1>
    %14 = arith.xori %10, %13 : vector<32x1xi1>
    %15 = arith.andi %14, %8 : vector<32x1xi1>
    %16 = vector.broadcast %4 : i32 to vector<32x1xi32>
    %17 = arith.addi %6, %16 : vector<32x1xi32>
    %18 = arith.select %15, %17, %6 : vector<32x1xi1>, vector<32x1xi32>
    %c1_i32_5 = arith.constant 1 : i32
    %19 = tpu.dynamic_rotate %1 by %c1_i32_5 dim 0 : vector<32x64xf32>, i32 -> vector<32x64xf32>
    %c1_i32_6 = arith.constant 1 : i32
    %20 = vector.broadcast %c1_i32_6 : i32 to vector<32x1xi32>
    %21 = arith.cmpi sge, %18, %20 : vector<32x1xi32>
    %cst = arith.constant 0.000000e+00 : f32
    %22 = vector.shape_cast %21 : vector<32x1xi1> to vector<32x1xi1>
    %23 = vector.broadcast %22 : vector<32x1xi1> to vector<32x64xi1>
    %24 = vector.broadcast %cst : f32 to vector<32x64xf32>
    %25 = arith.select %23, %19, %24 : vector<32x64xi1>, vector<32x64xf32>
    %c31_i32 = arith.constant 31 : i32
    %26 = tpu.dynamic_rotate %1 by %c31_i32 dim 0 : vector<32x64xf32>, i32 -> vector<32x64xf32>
    %c15_i32 = arith.constant 15 : i32
    %27 = vector.broadcast %c15_i32 : i32 to vector<32x1xi32>
    %28 = arith.cmpi slt, %18, %27 : vector<32x1xi32>
    %cst_7 = arith.constant 0.000000e+00 : f32
    %29 = vector.shape_cast %28 : vector<32x1xi1> to vector<32x1xi1>
    %30 = vector.broadcast %29 : vector<32x1xi1> to vector<32x64xi1>
    %31 = vector.broadcast %cst_7 : f32 to vector<32x64xf32>
    %32 = arith.select %30, %26, %31 : vector<32x64xi1>, vector<32x64xf32>
    %33 = tpu.concatenate %25, %1, %32 in 1 : vector<32x64xf32>, vector<32x64xf32>, vector<32x64xf32> -> vector<32x192xf32>
    %c0_8 = arith.constant 0 : index
    %c0_9 = arith.constant 0 : index
    %34 = vector.load %arg2[%c0_8, %c0_9] : memref<192x128xf32, #tpu.memory_space<vmem>>, vector<192x128xf32>
    %cst_10 = arith.constant dense<0.000000e+00> : vector<32x128xf32>
    %35 = tpu.matmul %33, %34, %cst_10 {dimension_numbers = #tpu.dot_dimension_numbers<[1], [0], [0], [1], [0, 0, 1, 1], [], []>} : vector<32x192xf32>, vector<192x128xf32>, vector<32x128xf32> -> vector<32x128xf32>
    %36 = vector.shape_cast %35 : vector<32x128xf32> to vector<2x16x128xf32>
    %c0_11 = arith.constant 0 : index
    %c0_12 = arith.constant 0 : index
    %c0_13 = arith.constant 0 : index
    %37 = vector.load %arg3[%c0_11, %c0_12, %c0_13] : memref<2x16x128xf32, #tpu.memory_space<vmem>>, vector<2x16x128xf32>
    tpu.vector_store %arg3[%c0_11, %c0_12, %c0_13], %36 {strides = array<i32>} : memref<2x16x128xf32, #tpu.memory_space<vmem>>, vector<2x16x128xf32>,
    return
  }
  func.func @transform_0(%arg0: i32) -> (i32, i32, i32) {
    %c0_i32 = arith.constant 0 : i32
    %c0_i32_0 = arith.constant 0 : i32
    %c0_i32_1 = arith.constant 0 : i32
    return %arg0, %c0_i32, %c0_i32_0 : i32, i32, i32
  }
  func.func @transform_1(%arg0: i32) -> (i32, i32) {
    %c0_i32 = arith.constant 0 : i32
    %c0_i32_0 = arith.constant 0 : i32
    %c0_i32_1 = arith.constant 0 : i32
    return %c0_i32, %c0_i32_0 : i32, i32
  }
  func.func @transform_2(%arg0: i32) -> (i32, i32, i32) {
    %c0_i32 = arith.constant 0 : i32
    %c0_i32_0 = arith.constant 0 : i32
    %c0_i32_1 = arith.constant 0 : i32
    return %arg0, %c0_i32, %c0_i32_0 : i32, i32, i32
  }
}

</mosaic_0001>

<llo_original>
// kernel: cdconv2d_nhwc.1
$region0: #{cdconv2d_nhwc.1}
  #allocation0 [shape = 'u32[]', space=smem, size = 0x4, offset = 0x4, fixed_abs, tag = 'smem constant byte address 0x4 - core index']
  #allocation1 [shape = 'u32[144,128]{1,0:T(1,128)}', space=vmem, size = 0x12000, scoped, tag = 'internal scratch']
  %s0 = inlined_call_operand.vmem [shape: f32[2,16,64], index: 0, kind: input, shape index: {}]
  %s1 = inlined_call_operand.vmem [shape: f32[192,128], index: 1, kind: input, shape index: {}]
  %s2 = inlined_call_operand.vmem [shape: f32[2,16,128], index: 2, kind: output, shape index: {}]
  %s3 = sld [smem:[#allocation0]]
  $region18: #{cdconv2d_nhwc.1} parent=0
    _
  %s5 = ssub.s32 1, %s3
  %s6 = scalar_select 0, %s5, %s3
  // Predicated region
  $region2: #{cdconv2d_nhwc.1} parent=0 // pred_check
    _
  $region3: #{cdconv2d_nhwc.1} parent=0 // pred_check_branch
    %8 = sbr.rel (0) target = $region5
  $region4: #{cdconv2d_nhwc.1} parent=0 // pred_region
    _
  $region5: #{cdconv2d_nhwc.1} parent=0 // pred_fallthru
    _
  // Predicated region
  $region6: #{cdconv2d_nhwc.1} parent=0 // pred_check
    _
  $region7: #{cdconv2d_nhwc.1} parent=0 // pred_check_branch
    %10 = sbr.rel (0) target = $region9
  $region8: #{cdconv2d_nhwc.1} parent=0 // pred_region
    _
  $region9: #{cdconv2d_nhwc.1} parent=0 // pred_fallthru
    _
  %v11 = vld [vmem:[%s0] sm:$0xff]
  %v12 = vld [vmem:[%s0 + $0x8] sm:$0xff]
  %v13 = vld [vmem:[%s0 + $0x10] sm:$0xff]
  %v14 = vld [vmem:[%s0 + $0x18] sm:$0xff]
  %v15 = vlaneseq
  %v16 = vshrl.u32 %v15, 7
  %v17 = vadd.s32 %v16, 8
  %v18 = vadd.s32 %v16, 16
  %v19 = vadd.s32 %v16, 24
  %vm20 = vcmp.lt.s32.totalorder %v16, 0
  %v21 = vsub.s32 0, %v16
  %v22 = vsel %vm20, %v21, %v16
  %v23 = vshrl.u32 %v22, 4
  %v24 = vand.u32 %v22, 15
  %v25 = vsub.s32 0, %v24
  %v26 = vsel %vm20, %v25, %v24
  %vm27 = vcmp.lt.s32.totalorder %v17, 0
  %v28 = vsub.s32 0, %v17
  %v29 = vsel %vm27, %v28, %v17
  %v30 = vshrl.u32 %v29, 4
  %v31 = vand.u32 %v29, 15
  %v32 = vsub.s32 0, %v31
  %v33 = vsel %vm27, %v32, %v31
  %vm34 = vcmp.lt.s32.totalorder %v18, 0
  %v35 = vsub.s32 0, %v18
  %v36 = vsel %vm34, %v35, %v18
  %v37 = vshrl.u32 %v36, 4
  %v38 = vand.u32 %v36, 15
  %v39 = vsub.s32 0, %v38
  %v40 = vsel %vm34, %v39, %v38
  %vm41 = vcmp.lt.s32.totalorder %v19, 0
  %v42 = vsub.s32 0, %v19
  %v43 = vsel %vm41, %v42, %v19
  %v44 = vshrl.u32 %v43, 4
  %v45 = vand.u32 %v43, 15
  %v46 = vsub.s32 0, %v45
  %v47 = vsel %vm41, %v46, %v45
  %vm48 = vcmp.ne.s32.totalorder %v26, 0
  %vm49 = vcmp.ne.s32.totalorder %v33, 0
  %vm50 = vcmp.ne.s32.totalorder %v40, 0
  %vm51 = vcmp.ne.s32.totalorder %v47, 0
  %vm52 = vcmp.lt.s32.totalorder %v26, 0
  %vm53 = vcmp.lt.s32.totalorder %v33, 0
  %vm54 = vcmp.lt.s32.totalorder %v40, 0
  %vm55 = vcmp.lt.s32.totalorder %v47, 0
  %vm56 = vmand %vm52, %vm48
  %vm57 = vmand %vm53, %vm49
  %vm58 = vmand %vm54, %vm50
  %vm59 = vmand %vm55, %vm51
  %v60 = vadd.s32 %v26, 16
  %v61 = vadd.s32 %v33, 16
  %v62 = vadd.s32 %v40, 16
  %v63 = vadd.s32 %v47, 16
  %v64 = vsel %vm56, %v60, %v26
  %v65 = vsel %vm57, %v61, %v33
  %v66 = vsel %vm58, %v62, %v40
  %v67 = vsel %vm59, %v63, %v47
  %v68 = vrot.slane %v11, 7
  %v69 = vrot.slane %v12, 7
  %v70 = vrot.slane %v13, 7
  %v71 = vrot.slane %v14, 7
  %vm72 = vcmp.lt.s32.totalorder %v16, 1
  %v73 = vsel %vm72, %v70, %v71
  %v74 = vsel %vm72, %v69, %v70
  %v75 = vsel %vm72, %v68, %v69
  %v76 = vsel %vm72, %v71, %v68
  %vm77 = vcmp.ge.s32.totalorder %v64, 1
  %vm78 = vcmp.ge.s32.totalorder %v65, 1
  %vm79 = vcmp.ge.s32.totalorder %v66, 1
  %vm80 = vcmp.ge.s32.totalorder %v67, 1
  %v81 = vsel %vm77, 1, 0
  %v82 = vsel %vm78, 1, 0
  %v83 = vsel %vm79, 1, 0
  %v84 = vsel %vm80, 1, 0
  %vm85 = vcmp.eq.s32.totalorder %v81, 1
  %vm86 = vcmp.eq.s32.totalorder %v82, 1
  %vm87 = vcmp.eq.s32.totalorder %v83, 1
  %vm88 = vcmp.eq.s32.totalorder %v84, 1
  %v89 = vsel %vm85, %v76, 0.0
  %v90 = vsel %vm86, %v75, 0.0
  %v91 = vsel %vm87, %v74, 0.0
  %v92 = vsel %vm88, %v73, 0.0
  %v93 = vrot.slane %v11, 1
  %v94 = vrot.slane %v12, 1
  %v95 = vrot.slane %v13, 1
  %v96 = vrot.slane %v14, 1
  %vm97 = vcmp.lt.s32.totalorder %v16, 7
  %v98 = vsel %vm97, %v95, %v96
  %v99 = vsel %vm97, %v94, %v95
  %v100 = vsel %vm97, %v93, %v94
  %v101 = vsel %vm97, %v96, %v93
  %vm102 = vcmp.lt.s32.totalorder %v64, 15
  %vm103 = vcmp.lt.s32.totalorder %v65, 15
  %vm104 = vcmp.lt.s32.totalorder %v66, 15
  %vm105 = vcmp.lt.s32.totalorder %v67, 15
  %v106 = vsel %vm102, 1, 0
  %v107 = vsel %vm103, 1, 0
  %v108 = vsel %vm104, 1, 0
  %v109 = vsel %vm105, 1, 0
  %vm110 = vcmp.eq.s32.totalorder %v106, 1
  %vm111 = vcmp.eq.s32.totalorder %v107, 1
  %vm112 = vcmp.eq.s32.totalorder %v108, 1
  %vm113 = vcmp.eq.s32.totalorder %v109, 1
  %v114 = vsel %vm110, %v100, 0.0
  %v115 = vsel %vm111, %v99, 0.0
  %v116 = vsel %vm112, %v98, 0.0
  %v117 = vsel %vm113, %v101, 0.0
  %122 = vrot.lane.b32.xlu0 %v11, 64
  %v123 = vpop.permute.xlu0 %122
  %124 = vrot.lane.b32.xlu0 %v12, 64
  %v125 = vpop.permute.xlu0 %124
  %126 = vrot.lane.b32.xlu0 %v13, 64
  %v127 = vpop.permute.xlu0 %126
  %128 = vrot.lane.b32.xlu0 %v14, 64
  %v129 = vpop.permute.xlu0 %128
  %vm134 = vcmask 523264
  %v135 = vsel %vm134, %v89, %v123
  %v136 = vsel %vm134, %v90, %v125
  %v137 = vsel %vm134, %v91, %v127
  %v138 = vsel %vm134, %v92, %v129
  %v139 = vld [vmem:[%s1] sm:$0xff]
  %v140 = vld [vmem:[%s1 + $0x8] sm:$0xff]
  %v141 = vld [vmem:[%s1 + $0x10] sm:$0xff]
  %v142 = vld [vmem:[%s1 + $0x18] sm:$0xff]
  %v143 = vld [vmem:[%s1 + $0x20] sm:$0xff]
  %v144 = vld [vmem:[%s1 + $0x28] sm:$0xff]
  %v145 = vld [vmem:[%s1 + $0x30] sm:$0xff]
  %v146 = vld [vmem:[%s1 + $0x38] sm:$0xff]
  %v147 = vld [vmem:[%s1 + $0x40] sm:$0xff]
  %v148 = vld [vmem:[%s1 + $0x48] sm:$0xff]
  %v149 = vld [vmem:[%s1 + $0x50] sm:$0xff]
  %v150 = vld [vmem:[%s1 + $0x58] sm:$0xff]
  %v151 = vld [vmem:[%s1 + $0x60] sm:$0xff]
  %v152 = vld [vmem:[%s1 + $0x68] sm:$0xff]
  %v153 = vld [vmem:[%s1 + $0x70] sm:$0xff]
  %v154 = vld [vmem:[%s1 + $0x78] sm:$0xff]
  %v155 = vld [vmem:[%s1 + $0x80] sm:$0xff]
  %v156 = vld [vmem:[%s1 + $0x88] sm:$0xff]
  %v157 = vld [vmem:[%s1 + $0x90] sm:$0xff]
  %v158 = vld [vmem:[%s1 + $0x98] sm:$0xff]
  %v159 = vld [vmem:[%s1 + $0xa0] sm:$0xff]
  %v160 = vld [vmem:[%s1 + $0xa8] sm:$0xff]
  %v161 = vld [vmem:[%s1 + $0xb0] sm:$0xff]
  %v162 = vld [vmem:[%s1 + $0xb8] sm:$0xff]
  %v164 = vsel %vm134, %v114, 0
  %v167 = vsel %vm134, %v115, 0
  %v170 = vsel %vm134, %v116, 0
  %v173 = vsel %vm134, %v117, 0
  %175 = vmatprep.subr.mxu0 0.0
  %176 = vmatpush1.msra.mxu0 %v154
  %177 = vmatprep.subr.mxu0 0.0
  %178 = vmatpush1.msra.mxu0 %v153
  %179 = vmatprep.subr.mxu0 0.0
  %180 = vmatpush1.msra.mxu0 %v152
  %181 = vmatprep.subr.mxu0 0.0
  %182 = vmatpush1.msra.mxu0 %v151
  %183 = vmatprep.subr.mxu0 0.0
  %184 = vmatpush1.msra.mxu0 %v150
  %185 = vmatprep.subr.mxu0 0.0
  %186 = vmatpush1.msra.mxu0 %v149
  %187 = vmatprep.subr.mxu0 0.0
  %188 = vmatpush1.msra.mxu0 %v148
  %189 = vmatprep.subr.mxu0 0.0
  %190 = vmatpush1.msra.mxu0 %v147
  %191 = vmatprep.subr.mxu0 0.0
  %192 = vmatpush1.msra.mxu0 %v146
  %193 = vmatprep.subr.mxu0 0.0
  %194 = vmatpush1.msra.mxu0 %v145
  %195 = vmatprep.subr.mxu0 0.0
  %196 = vmatpush1.msra.mxu0 %v144
  %197 = vmatprep.subr.mxu0 0.0
  %198 = vmatpush1.msra.mxu0 %v143
  %199 = vmatprep.subr.mxu0 0.0
  %200 = vmatpush1.msra.mxu0 %v142
  %201 = vmatprep.subr.mxu0 0.0
  %202 = vmatpush1.msra.mxu0 %v141
  %203 = vmatprep.subr.mxu0 0.0
  %204 = vmatpush1.msra.mxu0 %v140
  %205 = vmatprep.subr.mxu0 0.0
  %206 = vmatpush1.msra.mxu0 %v139
  %207 = vmatprep.subr.mxu0 0.0
  %208 = vmatpush2.msra.mxu0 0.0
  %209 = vmatprep.subr.mxu0 0.0
  %210 = vmatpush2.msra.mxu0 0.0
  %211 = vmatprep.subr.mxu0 0.0
  %212 = vmatpush2.msra.mxu0 0.0
  %213 = vmatprep.subr.mxu0 0.0
  %214 = vmatpush2.msra.mxu0 0.0
  %215 = vmatprep.subr.mxu0 0.0
  %216 = vmatpush2.msra.mxu0 0.0
  %217 = vmatprep.subr.mxu0 0.0
  %218 = vmatpush2.msra.mxu0 0.0
  %219 = vmatprep.subr.mxu0 0.0
  %220 = vmatpush2.msra.mxu0 0.0
  %221 = vmatprep.subr.mxu0 0.0
  %222 = vmatpush2.msra.mxu0 0.0
  %223 = vmatprep.subr.mxu0 0.0
  %224 = vmatpush2.msra.mxu0 %v162
  %225 = vmatprep.subr.mxu0 0.0
  %226 = vmatpush2.msra.mxu0 %v161
  %227 = vmatprep.subr.mxu0 0.0
  %228 = vmatpush2.msra.mxu0 %v160
  %229 = vmatprep.subr.mxu0 0.0
  %230 = vmatpush2.msra.mxu0 %v159
  %231 = vmatprep.subr.mxu0 0.0
  %232 = vmatpush2.msra.mxu0 %v158
  %233 = vmatprep.subr.mxu0 0.0
  %234 = vmatpush2.msra.mxu0 %v157
  %235 = vmatprep.subr.mxu0 0.0
  %236 = vmatpush2.msra.mxu0 %v156
  %237 = vmatprep.subr.mxu0 0.0
  %238 = vmatpush2.msra.mxu0 %v155
  %239 = vmatprep.mubr.f32.mxu0 %v164
  %240 = vmatmul.mubr.f32.gmra.mxu0 %v135
  %v241 = vpop.f32.mrf.mxu0
  %v242 = vadd.f32 0.0, %v241
  %v243 = vpop.f32.mrf.mxu0
  %244 = vmatprep.mubr.f32.mxu0 %v167
  %245 = vmatmul.mubr.f32.gmra.mxu0 %v136
  %v246 = vpop.f32.mrf.mxu0
  %v247 = vadd.f32 0.0, %v246
  %v248 = vpop.f32.mrf.mxu0
  %249 = vmatprep.mubr.f32.mxu0 %v170
  %250 = vmatmul.mubr.f32.gmra.mxu0 %v137
  %v251 = vpop.f32.mrf.mxu0
  %v252 = vadd.f32 0.0, %v251
  %v253 = vpop.f32.mrf.mxu0
  %254 = vmatprep.mubr.f32.mxu0 %v173
  %255 = vmatmul.mubr.f32.gmra.mxu0 %v138
  %v256 = vpop.f32.mrf.mxu0
  %v257 = vadd.f32 0.0, %v256
  %v258 = vpop.f32.mrf.mxu0
  %259 = vdwg.mxu0
  %260 = vst [vmem:[%s2] sm:$0xff] %v242
  %261 = vst [vmem:[%s2 + $0x8] sm:$0xff] %v247
  %262 = vst [vmem:[%s2 + $0x10] sm:$0xff] %v252
  %263 = vst [vmem:[%s2 + $0x18] sm:$0xff] %v257
  // Predicated region
  $region10: #{cdconv2d_nhwc.1} parent=0 // pred_check
    _
  $region11: #{cdconv2d_nhwc.1} parent=0 // pred_check_branch
    %265 = sbr.rel (0) target = $region13
  $region12: #{cdconv2d_nhwc.1} parent=0 // pred_region
    _
  $region13: #{cdconv2d_nhwc.1} parent=0 // pred_fallthru
    _
  // Predicated region
  $region14: #{cdconv2d_nhwc.1} parent=0 // pred_check
    _
  $region15: #{cdconv2d_nhwc.1} parent=0 // pred_check_branch
    %267 = sbr.rel (0) target = $region17
  $region16: #{cdconv2d_nhwc.1} parent=0 // pred_region
    _
  $region17: #{cdconv2d_nhwc.1} parent=0 // pred_fallthru
    _

// kernel: cdconv2d_nhwc.1
$region0: #{cdconv2d_nhwc.1}
  #allocation0 [shape = 'u32[]', space=smem, size = 0x4, offset = 0x4, fixed_abs, tag = 'smem constant byte address 0x4 - core index']
  #allocation1 [shape = 'u32[144,128]{1,0:T(1,128)}', space=vmem, size = 0x12000, scoped, tag = 'internal scratch']
  %s0 = inlined_call_operand.vmem [shape: f32[2,16,64], index: 0, kind: input, shape index: {}]
  %s1 = inlined_call_operand.vmem [shape: f32[192,128], index: 1, kind: input, shape index: {}]
  %s2 = inlined_call_operand.vmem [shape: f32[2,16,128], index: 2, kind: output, shape index: {}]
  %s3 = sld [smem:[#allocation0]]
  $region18: #{cdconv2d_nhwc.1} parent=0
    _
  %s5 = ssub.s32 1, %s3
  %s6 = scalar_select 0, %s5, %s3
  // Predicated region
  $region2: #{cdconv2d_nhwc.1} parent=0 // pred_check
    _
  $region3: #{cdconv2d_nhwc.1} parent=0 // pred_check_branch
    %8 = sbr.rel (0) target = $region5
  $region4: #{cdconv2d_nhwc.1} parent=0 // pred_region
    _
  $region5: #{cdconv2d_nhwc.1} parent=0 // pred_fallthru
    _
  // Predicated region
  $region6: #{cdconv2d_nhwc.1} parent=0 // pred_check
    _
  $region7: #{cdconv2d_nhwc.1} parent=0 // pred_check_branch
    %10 = sbr.rel (0) target = $region9
  $region8: #{cdconv2d_nhwc.1} parent=0 // pred_region
    _
  $region9: #{cdconv2d_nhwc.1} parent=0 // pred_fallthru
    _
  %v11 = vld [vmem:[%s0] sm:$0xff]
  %v12 = vld [vmem:[%s0 + $0x8] sm:$0xff]
  %v13 = vld [vmem:[%s0 + $0x10] sm:$0xff]
  %v14 = vld [vmem:[%s0 + $0x18] sm:$0xff]
  %v15 = vlaneseq
  %v16 = vshrl.u32 %v15, 7
  %v17 = vadd.s32 %v16, 8
  %v18 = vadd.s32 %v16, 16
  %v19 = vadd.s32 %v16, 24
  %vm20 = vcmp.lt.s32.totalorder %v16, 0
  %v21 = vsub.s32 0, %v16
  %v22 = vsel %vm20, %v21, %v16
  %v23 = vshrl.u32 %v22, 4
  %v24 = vand.u32 %v22, 15
  %v25 = vsub.s32 0, %v24
  %v26 = vsel %vm20, %v25, %v24
  %vm27 = vcmp.lt.s32.totalorder %v17, 0
  %v28 = vsub.s32 0, %v17
  %v29 = vsel %vm27, %v28, %v17
  %v30 = vshrl.u32 %v29, 4
  %v31 = vand.u32 %v29, 15
  %v32 = vsub.s32 0, %v31
  %v33 = vsel %vm27, %v32, %v31
  %vm34 = vcmp.lt.s32.totalorder %v18, 0
  %v35 = vsub.s32 0, %v18
  %v36 = vsel %vm34, %v35, %v18
  %v37 = vshrl.u32 %v36, 4
  %v38 = vand.u32 %v36, 15
  %v39 = vsub.s32 0, %v38
  %v40 = vsel %vm34, %v39, %v38
  %vm41 = vcmp.lt.s32.totalorder %v19, 0
  %v42 = vsub.s32 0, %v19
  %v43 = vsel %vm41, %v42, %v19
  %v44 = vshrl.u32 %v43, 4
  %v45 = vand.u32 %v43, 15
  %v46 = vsub.s32 0, %v45
  %v47 = vsel %vm41, %v46, %v45
  %vm48 = vcmp.ne.s32.totalorder %v26, 0
  %vm49 = vcmp.ne.s32.totalorder %v33, 0
  %vm50 = vcmp.ne.s32.totalorder %v40, 0
  %vm51 = vcmp.ne.s32.totalorder %v47, 0
  %vm52 = vcmp.lt.s32.totalorder %v26, 0
  %vm53 = vcmp.lt.s32.totalorder %v33, 0
  %vm54 = vcmp.lt.s32.totalorder %v40, 0
  %vm55 = vcmp.lt.s32.totalorder %v47, 0
  %vm56 = vmand %vm52, %vm48
  %vm57 = vmand %vm53, %vm49
  %vm58 = vmand %vm54, %vm50
  %vm59 = vmand %vm55, %vm51
  %v60 = vadd.s32 %v26, 16
  %v61 = vadd.s32 %v33, 16
  %v62 = vadd.s32 %v40, 16
  %v63 = vadd.s32 %v47, 16
  %v64 = vsel %vm56, %v60, %v26
  %v65 = vsel %vm57, %v61, %v33
  %v66 = vsel %vm58, %v62, %v40
  %v67 = vsel %vm59, %v63, %v47
  %v68 = vrot.slane %v11, 7
  %v69 = vrot.slane %v12, 7
  %v70 = vrot.slane %v13, 7
  %v71 = vrot.slane %v14, 7
  %vm72 = vcmp.lt.s32.totalorder %v16, 1
  %v73 = vsel %vm72, %v70, %v71
  %v74 = vsel %vm72, %v69, %v70
  %v75 = vsel %vm72, %v68, %v69
  %v76 = vsel %vm72, %v71, %v68
  %vm77 = vcmp.ge.s32.totalorder %v64, 1
  %vm78 = vcmp.ge.s32.totalorder %v65, 1
  %vm79 = vcmp.ge.s32.totalorder %v66, 1
  %vm80 = vcmp.ge.s32.totalorder %v67, 1
  %v81 = vsel %vm77, 1, 0
  %v82 = vsel %vm78, 1, 0
  %v83 = vsel %vm79, 1, 0
  %v84 = vsel %vm80, 1, 0
  %vm85 = vcmp.eq.s32.totalorder %v81, 1
  %vm86 = vcmp.eq.s32.totalorder %v82, 1
  %vm87 = vcmp.eq.s32.totalorder %v83, 1
  %vm88 = vcmp.eq.s32.totalorder %v84, 1
  %v89 = vsel %vm85, %v76, 0.0
  %v90 = vsel %vm86, %v75, 0.0
  %v91 = vsel %vm87, %v74, 0.0
  %v92 = vsel %vm88, %v73, 0.0
  %v93 = vrot.slane %v11, 1
  %v94 = vrot.slane %v12, 1
  %v95 = vrot.slane %v13, 1
  %v96 = vrot.slane %v14, 1
  %vm97 = vcmp.lt.s32.totalorder %v16, 7
  %v98 = vsel %vm97, %v95, %v96
  %v99 = vsel %vm97, %v94, %v95
  %v100 = vsel %vm97, %v93, %v94
  %v101 = vsel %vm97, %v96, %v93
  %vm102 = vcmp.lt.s32.totalorder %v64, 15
  %vm103 = vcmp.lt.s32.totalorder %v65, 15
  %vm104 = vcmp.lt.s32.totalorder %v66, 15
  %vm105 = vcmp.lt.s32.totalorder %v67, 15
  %v106 = vsel %vm102, 1, 0
  %v107 = vsel %vm103, 1, 0
  %v108 = vsel %vm104, 1, 0
  %v109 = vsel %vm105, 1, 0
  %vm110 = vcmp.eq.s32.totalorder %v106, 1
  %vm111 = vcmp.eq.s32.totalorder %v107, 1
  %vm112 = vcmp.eq.s32.totalorder %v108, 1
  %vm113 = vcmp.eq.s32.totalorder %v109, 1
  %v114 = vsel %vm110, %v100, 0.0
  %v115 = vsel %vm111, %v99, 0.0
  %v116 = vsel %vm112, %v98, 0.0
  %v117 = vsel %vm113, %v101, 0.0
  %122 = vrot.lane.b32.xlu0 %v11, 64
  %v123 = vpop.permute.xlu0 %122
  %124 = vrot.lane.b32.xlu0 %v12, 64
  %v125 = vpop.permute.xlu0 %124
  %126 = vrot.lane.b32.xlu0 %v13, 64
  %v127 = vpop.permute.xlu0 %126
  %128 = vrot.lane.b32.xlu0 %v14, 64
  %v129 = vpop.permute.xlu0 %128
  %vm134 = vcmask 523264
  %v135 = vsel %vm134, %v89, %v123
  %v136 = vsel %vm134, %v90, %v125
  %v137 = vsel %vm134, %v91, %v127
  %v138 = vsel %vm134, %v92, %v129
  %v139 = vld [vmem:[%s1] sm:$0xff]
  %v140 = vld [vmem:[%s1 + $0x8] sm:$0xff]
  %v141 = vld [vmem:[%s1 + $0x10] sm:$0xff]
  %v142 = vld [vmem:[%s1 + $0x18] sm:$0xff]
  %v143 = vld [vmem:[%s1 + $0x20] sm:$0xff]
  %v144 = vld [vmem:[%s1 + $0x28] sm:$0xff]
  %v145 = vld [vmem:[%s1 + $0x30] sm:$0xff]
  %v146 = vld [vmem:[%s1 + $0x38] sm:$0xff]
  %v147 = vld [vmem:[%s1 + $0x40] sm:$0xff]
  %v148 = vld [vmem:[%s1 + $0x48] sm:$0xff]
  %v149 = vld [vmem:[%s1 + $0x50] sm:$0xff]
  %v150 = vld [vmem:[%s1 + $0x58] sm:$0xff]
  %v151 = vld [vmem:[%s1 + $0x60] sm:$0xff]
  %v152 = vld [vmem:[%s1 + $0x68] sm:$0xff]
  %v153 = vld [vmem:[%s1 + $0x70] sm:$0xff]
  %v154 = vld [vmem:[%s1 + $0x78] sm:$0xff]
  %v155 = vld [vmem:[%s1 + $0x80] sm:$0xff]
  %v156 = vld [vmem:[%s1 + $0x88] sm:$0xff]
  %v157 = vld [vmem:[%s1 + $0x90] sm:$0xff]
  %v158 = vld [vmem:[%s1 + $0x98] sm:$0xff]
  %v159 = vld [vmem:[%s1 + $0xa0] sm:$0xff]
  %v160 = vld [vmem:[%s1 + $0xa8] sm:$0xff]
  %v161 = vld [vmem:[%s1 + $0xb0] sm:$0xff]
  %v162 = vld [vmem:[%s1 + $0xb8] sm:$0xff]
  %v164 = vsel %vm134, %v114, 0
  %v167 = vsel %vm134, %v115, 0
  %v170 = vsel %vm134, %v116, 0
  %v173 = vsel %vm134, %v117, 0
  %175 = vmatprep.subr.mxu0 0.0
  %176 = vmatpush1.msra.mxu0 %v154
  %177 = vmatprep.subr.mxu0 0.0
  %178 = vmatpush1.msra.mxu0 %v153
  %179 = vmatprep.subr.mxu0 0.0
  %180 = vmatpush1.msra.mxu0 %v152
  %181 = vmatprep.subr.mxu0 0.0
  %182 = vmatpush1.msra.mxu0 %v151
  %183 = vmatprep.subr.mxu0 0.0
  %184 = vmatpush1.msra.mxu0 %v150
  %185 = vmatprep.subr.mxu0 0.0
  %186 = vmatpush1.msra.mxu0 %v149
  %187 = vmatprep.subr.mxu0 0.0
  %188 = vmatpush1.msra.mxu0 %v148
  %189 = vmatprep.subr.mxu0 0.0
  %190 = vmatpush1.msra.mxu0 %v147
  %191 = vmatprep.subr.mxu0 0.0
  %192 = vmatpush1.msra.mxu0 %v146
  %193 = vmatprep.subr.mxu0 0.0
  %194 = vmatpush1.msra.mxu0 %v145
  %195 = vmatprep.subr.mxu0 0.0
  %196 = vmatpush1.msra.mxu0 %v144
  %197 = vmatprep.subr.mxu0 0.0
  %198 = vmatpush1.msra.mxu0 %v143
  %199 = vmatprep.subr.mxu0 0.0
  %200 = vmatpush1.msra.mxu0 %v142
  %201 = vmatprep.subr.mxu0 0.0
  %202 = vmatpush1.msra.mxu0 %v141
  %203 = vmatprep.subr.mxu0 0.0
  %204 = vmatpush1.msra.mxu0 %v140
  %205 = vmatprep.subr.mxu0 0.0
  %206 = vmatpush1.msra.mxu0 %v139
  %207 = vmatprep.subr.mxu0 0.0
  %208 = vmatpush2.msra.mxu0 0.0
  %209 = vmatprep.subr.mxu0 0.0
  %210 = vmatpush2.msra.mxu0 0.0
  %211 = vmatprep.subr.mxu0 0.0
  %212 = vmatpush2.msra.mxu0 0.0
  %213 = vmatprep.subr.mxu0 0.0
  %214 = vmatpush2.msra.mxu0 0.0
  %215 = vmatprep.subr.mxu0 0.0
  %216 = vmatpush2.msra.mxu0 0.0
  %217 = vmatprep.subr.mxu0 0.0
  %218 = vmatpush2.msra.mxu0 0.0
  %219 = vmatprep.subr.mxu0 0.0
  %220 = vmatpush2.msra.mxu0 0.0
  %221 = vmatprep.subr.mxu0 0.0
  %222 = vmatpush2.msra.mxu0 0.0
  %223 = vmatprep.subr.mxu0 0.0
  %224 = vmatpush2.msra.mxu0 %v162
  %225 = vmatprep.subr.mxu0 0.0
  %226 = vmatpush2.msra.mxu0 %v161
  %227 = vmatprep.subr.mxu0 0.0
  %228 = vmatpush2.msra.mxu0 %v160
  %229 = vmatprep.subr.mxu0 0.0
  %230 = vmatpush2.msra.mxu0 %v159
  %231 = vmatprep.subr.mxu0 0.0
  %232 = vmatpush2.msra.mxu0 %v158
  %233 = vmatprep.subr.mxu0 0.0
  %234 = vmatpush2.msra.mxu0 %v157
  %235 = vmatprep.subr.mxu0 0.0
  %236 = vmatpush2.msra.mxu0 %v156
  %237 = vmatprep.subr.mxu0 0.0
  %238 = vmatpush2.msra.mxu0 %v155
  %239 = vmatprep.mubr.f32.mxu0 %v164
  %240 = vmatmul.mubr.f32.gmra.mxu0 %v135
  %v241 = vpop.f32.mrf.mxu0
  %v242 = vadd.f32 0.0, %v241
  %v243 = vpop.f32.mrf.mxu0
  %244 = vmatprep.mubr.f32.mxu0 %v167
  %245 = vmatmul.mubr.f32.gmra.mxu0 %v136
  %v246 = vpop.f32.mrf.mxu0
  %v247 = vadd.f32 0.0, %v246
  %v248 = vpop.f32.mrf.mxu0
  %249 = vmatprep.mubr.f32.mxu0 %v170
  %250 = vmatmul.mubr.f32.gmra.mxu0 %v137
  %v251 = vpop.f32.mrf.mxu0
  %v252 = vadd.f32 0.0, %v251
  %v253 = vpop.f32.mrf.mxu0
  %254 = vmatprep.mubr.f32.mxu0 %v173
  %255 = vmatmul.mubr.f32.gmra.mxu0 %v138
  %v256 = vpop.f32.mrf.mxu0
  %v257 = vadd.f32 0.0, %v256
  %v258 = vpop.f32.mrf.mxu0
  %259 = vdwg.mxu0
  %260 = vst [vmem:[%s2] sm:$0xff] %v242
  %261 = vst [vmem:[%s2 + $0x8] sm:$0xff] %v247
  %262 = vst [vmem:[%s2 + $0x10] sm:$0xff] %v252
  %263 = vst [vmem:[%s2 + $0x18] sm:$0xff] %v257
  // Predicated region
  $region10: #{cdconv2d_nhwc.1} parent=0 // pred_check
    _
  $region11: #{cdconv2d_nhwc.1} parent=0 // pred_check_branch
    %265 = sbr.rel (0) target = $region13
  $region12: #{cdconv2d_nhwc.1} parent=0 // pred_region
    _
  $region13: #{cdconv2d_nhwc.1} parent=0 // pred_fallthru
    _
  // Predicated region
  $region14: #{cdconv2d_nhwc.1} parent=0 // pred_check
    _
  $region15: #{cdconv2d_nhwc.1} parent=0 // pred_check_branch
    %267 = sbr.rel (0) target = $region17
  $region16: #{cdconv2d_nhwc.1} parent=0 // pred_region
    _
  $region17: #{cdconv2d_nhwc.1} parent=0 // pred_fallthru
    _

</llo_original>
